<compile_context>
chip_gen: v5e
topology: v5e:2x2
jax: 0.10.0
libtpu: 0.0.40
codegen_flags: <defaults>
</compile_context>

<pallas_src>
import functools

import jax
import jax.numpy as jnp
from jax.experimental import pallas as pl
from jax.experimental.pallas import tpu as pltpu


def _round_up(x, m):
    return ((x + m - 1) // m) * m


def pack_params(w1, b1, w2, b2, w3, b3):
    """Pack the three layers into MXU-friendly [24, 8] weights + [24, 1] biases.

    rows  0:8  -> W1 zero-padded to [8, 8] (out 6, in 8), b1 padded to [8]
    rows  8:16 -> W2 zero-padded to [8, 8] (out 4, in 6), b2 padded to [8]
    rows 16:24 -> W3 zero-padded to [8, 8] (out 1, in 4), b3 padded to [8]

    Zero padding keeps the math exact: padded output rows produce sigmoid(0)
    activations that the next layer's zero-padded input columns ignore.
    """
    w = jnp.zeros((24, 8), jnp.float32)
    w = w.at[0:6, 0:8].set(w1.astype(jnp.float32))
    w = w.at[8:12, 0:6].set(w2.astype(jnp.float32))
    w = w.at[16:17, 0:4].set(w3.astype(jnp.float32))
    b = jnp.zeros((24, 1), jnp.float32)
    b = b.at[0:6, 0].set(b1.astype(jnp.float32))
    b = b.at[8:12, 0].set(b2.astype(jnp.float32))
    b = b.at[16, 0].set(b3.astype(jnp.float32)[0])
    return w, b


def _sigmoid(z):
    # sigmoid(z) == 0.5*(1 + tanh(z/2)) exactly; a single EUP transcendental
    # per element (vs exp + full divide) — the EUP has exactly one VLIW slot.
    return 0.5 * jnp.tanh(0.5 * z) + 0.5


def mlp_kernel(xT_ref, w_ref, b_ref, o_ref):
    """Fused 3-layer MLP on one lane-dense batch tile.

    xT_ref : [8, TN]   inputs (features on sublanes, batch on lanes)
    w_ref  : [24, 8]   packed [8,8] weight blocks; constant index_map keeps
                       them VMEM-resident across grid steps
    b_ref  : [24, 1]   packed bias columns
    o_ref  : [1, TN]   sigmoid(L3(sigmoid(L2(sigmoid(L1(x))))))
    """
    xT = xT_ref[...]                                          # [8, TN] f32

    # Contractions go to the MXU (tiny K=8 padded tiles — the MXU/vex slot is
    # otherwise idle); bias add + sigmoid stay on the VPU/EUP.  Everything is
    # kept in f32 for v5e portability (no bf16 VPU/EUP there).
    h1 = _sigmoid(
        jnp.dot(w_ref[0:8, :], xT, preferred_element_type=jnp.float32)
        + b_ref[0:8, :])                                      # [8, TN] rows 6:8 dummy
    h2 = _sigmoid(
        jnp.dot(w_ref[8:16, :], h1, preferred_element_type=jnp.float32)
        + b_ref[8:16, :])                                     # [8, TN] rows 4:8 dummy
    z3 = jnp.dot(w_ref[16:24, :], h2, preferred_element_type=jnp.float32)
    o_ref[...] = _sigmoid(z3[0:1, :] + b_ref[16:17, :]).astype(o_ref.dtype)


@functools.partial(jax.jit, static_argnames=("block_n",))
def mlp_forward(x, w1, b1, w2, b2, w3, b3, *, block_n=8192):
    """PyTorch-equivalent forward: sigmoid(L3(sigmoid(L2(sigmoid(L1(x)))))).

    x: [N, 8] -> returns [N, 1].  The batch is placed on the lane axis, padded
    to a multiple of the tile, and streamed through a parallel grid over N.
    """
    n, f_in = x.shape
    assert f_in == 8, "model expects 8 input features"
    assert block_n % 128 == 0

    n_pad = max(128, _round_up(n, 128))
    tn = min(block_n, n_pad)
    # Keep at least two grid steps when possible so both v7x TensorCores get
    # work under dimension_semantics=("parallel",).
    if n_pad == tn and n_pad >= 256:
        tn = _round_up(n_pad // 2, 128)
    n_pad = _round_up(n_pad, tn)

    # Relayout: batch -> lanes.  Under this jit the cast/transpose/pad fuse
    # into a single XLA relayout op feeding the kernel.
    # TODO(synk): have the upstream producer emit x feature-major ([8, N]) so
    # this extra HBM round trip of the input disappears entirely.
    xT = x.astype(jnp.float32).T                              # [8, N]
    if n_pad != n:
        xT = jnp.pad(xT, ((0, 0), (0, n_pad - n)))            # zero lanes -> sliced off

    w_packed, b_packed = pack_params(w1, b1, w2, b2, w3, b3)

    out = pl.pallas_call(
        mlp_kernel,
        out_shape=jax.ShapeDtypeStruct((1, n_pad), jnp.float32),
        grid=(n_pad // tn,),
        in_specs=[
            pl.BlockSpec((8, tn), lambda i: (0, i)),          # streamed x^T tiles
            pl.BlockSpec((24, 8), lambda i: (0, 0)),          # weights stay resident
            pl.BlockSpec((24, 1), lambda i: (0, 0)),          # biases stay resident
        ],
        out_specs=pl.BlockSpec((1, tn), lambda i: (0, i)),    # lane-dense output
        compiler_params=pltpu.CompilerParams(
            dimension_semantics=("parallel",)),               # shardable across TCs
    )(xT, w_packed, b_packed)

    return out[:, :n].T                                       # [N, 1]


def init_linear(key, out_features, in_features):
    """Deterministic init mimicking torch.nn.Linear's U(-1/sqrt(in), 1/sqrt(in))."""
    kw, kb = jax.random.split(key)
    bound = 1.0 / jnp.sqrt(jnp.float32(in_features))
    w = jax.random.uniform(kw, (out_features, in_features), jnp.float32, -bound, bound)
    b = jax.random.uniform(kb, (out_features,), jnp.float32, -bound, bound)
    return w, b


if __name__ == "__main__":
    key = jax.random.PRNGKey(0)
    kx, k1, k2, k3 = jax.random.split(key, 4)

    batch = 200                                   # exercises padding + 2 grid steps
    x = jax.random.normal(kx, (batch, 8), jnp.float32)

    w1, b1 = init_linear(k1, 6, 8)   # Linear(8, 6)
    w2, b2 = init_linear(k2, 4, 6)   # Linear(6, 4)
    w3, b3 = init_linear(k3, 1, 4)   # Linear(4, 1)

    out = mlp_forward(x, w1, b1, w2, b2, w3, b3)
    out = jax.block_until_ready(out)

    # Pure-JAX reference (same semantics as the PyTorch forward).
    def ref(x):
        h = jax.nn.sigmoid(x @ w1.T + b1)
        h = jax.nn.sigmoid(h @ w2.T + b2)
        return jax.nn.sigmoid(h @ w3.T + b3)

    expected = ref(x)
    assert out.shape == (batch, 1)
    assert jnp.allclose(out, expected, atol=1e-4), "mismatch vs reference"

    print("KERNEL_OK")
</pallas_src>

<mosaic_0001>
module attributes {stable_mosaic.version = 11 : i64} {
  func.func @mlp_kernel(%arg0: i32, %arg1: memref<8x128xf32, #tpu.memory_space<vmem>>, %arg2: memref<24x8xf32, #tpu.memory_space<vmem>>, %arg3: memref<24x1xf32, #tpu.memory_space<vmem>>, %arg4: memref<1x128xf32, #tpu.memory_space<vmem>>) attributes {dimension_semantics = [#tpu.dimension_semantics<parallel>], iteration_bounds = array<i64: 2>, scalar_prefetch = 0 : i64, scratch_operands = 0 : i64, tpu.core_type = #tpu.core_type<tc>, window_params = [{transform_indices = @transform_0, window_bounds = array<i64: 8, 128>}, {pipeline_mode = #tpu.pipeline_mode<synchronous>, transform_indices = @transform_1, window_bounds = array<i64: 24, 8>}, {pipeline_mode = #tpu.pipeline_mode<synchronous>, transform_indices = @transform_2, window_bounds = array<i64: 24, 1>}, {transform_indices = @transform_3, window_bounds = array<i64: 1, 128>}]} {
    %c0 = arith.constant 0 : index
    %c0_0 = arith.constant 0 : index
    %0 = vector.load %arg1[%c0, %c0_0] : memref<8x128xf32, #tpu.memory_space<vmem>>, vector<8x128xf32>
    %c0_1 = arith.constant 0 : index
    %c0_2 = arith.constant 0 : index
    %1 = vector.load %arg2[%c0_1, %c0_2] : memref<24x8xf32, #tpu.memory_space<vmem>>, vector<8x8xf32>
    %cst = arith.constant dense<0.000000e+00> : vector<8x128xf32>
    %2 = tpu.matmul %1, %0, %cst {dimension_numbers = #tpu.dot_dimension_numbers<[1], [0], [0], [1], [0, 0, 1, 1], [], []>} : vector<8x8xf32>, vector<8x128xf32>, vector<8x128xf32> -> vector<8x128xf32>
    %c0_3 = arith.constant 0 : index
    %c0_4 = arith.constant 0 : index
    %3 = vector.load %arg3[%c0_3, %c0_4] : memref<24x1xf32, #tpu.memory_space<vmem>>, vector<8x1xf32>
    %4 = vector.broadcast %3 : vector<8x1xf32> to vector<8x128xf32>
    %5 = arith.addf %2, %4 : vector<8x128xf32>
    %cst_5 = arith.constant 5.000000e-01 : f32
    %6 = vector.broadcast %cst_5 : f32 to vector<8x128xf32>
    %7 = arith.mulf %6, %5 : vector<8x128xf32>
    %8 = math.tanh %7 : vector<8x128xf32>
    %cst_6 = arith.constant 5.000000e-01 : f32
    %9 = vector.broadcast %cst_6 : f32 to vector<8x128xf32>
    %10 = arith.mulf %9, %8 : vector<8x128xf32>
    %cst_7 = arith.constant 5.000000e-01 : f32
    %11 = vector.broadcast %cst_7 : f32 to vector<8x128xf32>
    %12 = arith.addf %10, %11 : vector<8x128xf32>
    %c8 = arith.constant 8 : index
    %c0_8 = arith.constant 0 : index
    %13 = vector.load %arg2[%c8, %c0_8] : memref<24x8xf32, #tpu.memory_space<vmem>>, vector<8x8xf32>
    %cst_9 = arith.constant dense<0.000000e+00> : vector<8x128xf32>
    %14 = tpu.matmul %13, %12, %cst_9 {dimension_numbers = #tpu.dot_dimension_numbers<[1], [0], [0], [1], [0, 0, 1, 1], [], []>} : vector<8x8xf32>, vector<8x128xf32>, vector<8x128xf32> -> vector<8x128xf32>
    %c8_10 = arith.constant 8 : index
    %c0_11 = arith.constant 0 : index
    %15 = vector.load %arg3[%c8_10, %c0_11] : memref<24x1xf32, #tpu.memory_space<vmem>>, vector<8x1xf32>
    %16 = vector.broadcast %15 : vector<8x1xf32> to vector<8x128xf32>
    %17 = arith.addf %14, %16 : vector<8x128xf32>
    %cst_12 = arith.constant 5.000000e-01 : f32
    %18 = vector.broadcast %cst_12 : f32 to vector<8x128xf32>
    %19 = arith.mulf %18, %17 : vector<8x128xf32>
    %20 = math.tanh %19 : vector<8x128xf32>
    %cst_13 = arith.constant 5.000000e-01 : f32
    %21 = vector.broadcast %cst_13 : f32 to vector<8x128xf32>
    %22 = arith.mulf %21, %20 : vector<8x128xf32>
    %cst_14 = arith.constant 5.000000e-01 : f32
    %23 = vector.broadcast %cst_14 : f32 to vector<8x128xf32>
    %24 = arith.addf %22, %23 : vector<8x128xf32>
    %c16 = arith.constant 16 : index
    %c0_15 = arith.constant 0 : index
    %25 = vector.load %arg2[%c16, %c0_15] : memref<24x8xf32, #tpu.memory_space<vmem>>, vector<8x8xf32>
    %cst_16 = arith.constant dense<0.000000e+00> : vector<8x128xf32>
    %26 = tpu.matmul %25, %24, %cst_16 {dimension_numbers = #tpu.dot_dimension_numbers<[1], [0], [0], [1], [0, 0, 1, 1], [], []>} : vector<8x8xf32>, vector<8x128xf32>, vector<8x128xf32> -> vector<8x128xf32>
    %27 = vector.extract_strided_slice %26 {offsets = [0, 0], sizes = [1, 128], strides = [1, 1]} : vector<8x128xf32> to vector<1x128xf32>
    %c16_17 = arith.constant 16 : index
    %c0_18 = arith.constant 0 : index
    %28 = vector.load %arg3[%c16_17, %c0_18] : memref<24x1xf32, #tpu.memory_space<vmem>>, vector<1x1xf32>
    %29 = vector.broadcast %28 : vector<1x1xf32> to vector<1x128xf32>
    %30 = arith.addf %27, %29 : vector<1x128xf32>
    %cst_19 = arith.constant 5.000000e-01 : f32
    %31 = vector.broadcast %cst_19 : f32 to vector<1x128xf32>
    %32 = arith.mulf %31, %30 : vector<1x128xf32>
    %33 = math.tanh %32 : vector<1x128xf32>
    %cst_20 = arith.constant 5.000000e-01 : f32
    %34 = vector.broadcast %cst_20 : f32 to vector<1x128xf32>
    %35 = arith.mulf %34, %33 : vector<1x128xf32>
    %cst_21 = arith.constant 5.000000e-01 : f32
    %36 = vector.broadcast %cst_21 : f32 to vector<1x128xf32>
    %37 = arith.addf %35, %36 : vector<1x128xf32>
    %c0_22 = arith.constant 0 : index
    %c0_23 = arith.constant 0 : index
    %38 = vector.load %arg4[%c0_22, %c0_23] : memref<1x128xf32, #tpu.memory_space<vmem>>, vector<1x128xf32>
    tpu.vector_store %arg4[%c0_22, %c0_23], %37 {strides = array<i32>} : memref<1x128xf32, #tpu.memory_space<vmem>>, vector<1x128xf32>,
    return
  }
  func.func @transform_0(%arg0: i32) -> (i32, i32) {
    %c0_i32 = arith.constant 0 : i32
    %c0_i32_0 = arith.constant 0 : i32
    return %c0_i32, %arg0 : i32, i32
  }
  func.func @transform_1(%arg0: i32) -> (i32, i32) {
    %c0_i32 = arith.constant 0 : i32
    %c0_i32_0 = arith.constant 0 : i32
    %c0_i32_1 = arith.constant 0 : i32
    return %c0_i32, %c0_i32_0 : i32, i32
  }
  func.func @transform_2(%arg0: i32) -> (i32, i32) {
    %c0_i32 = arith.constant 0 : i32
    %c0_i32_0 = arith.constant 0 : i32
    %c0_i32_1 = arith.constant 0 : i32
    return %c0_i32, %c0_i32_0 : i32, i32
  }
  func.func @transform_3(%arg0: i32) -> (i32, i32) {
    %c0_i32 = arith.constant 0 : i32
    %c0_i32_0 = arith.constant 0 : i32
    return %c0_i32, %arg0 : i32, i32
  }
}

</mosaic_0001>

<llo_original>
// kernel: mlp_forward.1
$region0: #{mlp_forward.1}
  #allocation0 [shape = 'u32[]', space=smem, size = 0x4, offset = 0x4, fixed_abs, tag = 'smem constant byte address 0x4 - core index']
  #allocation1 [shape = 'u32[72,128]{1,0:T(1,128)}', space=vmem, size = 0x9000, scoped, tag = 'internal scratch']
  %s0 = inlined_call_operand.vmem [shape: f32[8,256], index: 0, kind: input, shape index: {}]
  %s1 = inlined_call_operand.vmem [shape: f32[24,8], index: 1, kind: input, shape index: {}]
  %s2 = inlined_call_operand.vmem [shape: f32[24,1], index: 2, kind: input, shape index: {}]
  %s3 = inlined_call_operand.vmem [shape: f32[1,256], index: 3, kind: output, shape index: {}]
  %s4 = sld [smem:[#allocation0]]
  $region45: #{mlp_forward.1} parent=0
    _
  %s6 = ssub.s32 1, %s4
  %s7 = scalar_select 0, %s6, %s4
  loop: start=0, step=1, limit=4
  $region2: #{mlp_forward.1} parent=0 // loop_pre_header
    _
  $region3: #{mlp_forward.1} parent=0 // loop_header
    %s9 = sphi 0, %s13
    %p10 = scmp.ge.s32.totalorder %s9, 4
    %s19 = sphi 0, %s21
    %s22 = sphi 0, %s19
    %s23 = sphi 0, %s22
    %s39 = sphi 0, %s23
    %s43 = sphi 0, %s43
    %s45 = sphi 0, %s43
    %s46 = sphi 0, %s45
    %s60 = sphi 0, %s46
    %s64 = sphi 0, %s64
    %s66 = sphi 0, %s64
    %s67 = sphi 0, %s66
    %s81 = sphi 0, %s67
    %s87 = sphi 0, %s89
    %s90 = sphi 0, %s87
    %s91 = sphi 0, %s90
    %s107 = sphi 0, %s91
  $region4: #{mlp_forward.1} parent=0 // loop_header_branch
    %12 = sbr.rel (%p10) target = $region8
  $region5: #{mlp_forward.1} parent=0 // loop_body
    %s14 = ssub.s32 %s9, 1
    %s15 = ssub.s32 %s9, 2
    %s16 = sadd.s32 %s9, 1
    %s17 = ssub.s32 %s9, %s16
    %p18 = scmp.eq.s32.totalorder %s17, 0
    %s20 = sadd.s32 %s19, 1
    %s21 = scalar_select %p18, %s19, %s20
    %p24 = pneg %p18
    %p25 = scmp.eq.s32.totalorder %s9, 1
    %p26 = por %p24, %p25
    %p27 = scmp.ne.s32.totalorder %s19, %s22
    %p28 = scmp.eq.s32.totalorder %s9, 0
    %p29 = por %p27, %p28
    %p30 = scmp.ne.s32.totalorder %s19, %s22
    %p31 = scmp.eq.s32.totalorder %s14, 1
    %p32 = por %p30, %p31
    %p33 = scmp.ne.s32.totalorder %s22, %s23
    %p34 = scmp.eq.s32.totalorder %s14, 0
    %p35 = por %p33, %p34
    %p36 = scmp.ne.s32.totalorder %s22, %s23
    %p37 = scmp.eq.s32.totalorder %s15, 1
    %p38 = por %p36, %p37
    %p40 = scmp.ne.s32.totalorder %s23, %s39
    %p41 = scmp.eq.s32.totalorder %s15, 0
    %p42 = por %p40, %p41
    %s44 = sadd.s32 %s43, 1
    %p47 = scmp.eq.s32.totalorder %s9, 1
    %p48 = scmp.ne.s32.totalorder %s43, %s45
    %p49 = scmp.eq.s32.totalorder %s9, 0
    %p50 = por %p48, %p49
    %p51 = scmp.ne.s32.totalorder %s43, %s45
    %p52 = scmp.eq.s32.totalorder %s14, 1
    %p53 = por %p51, %p52
    %p54 = scmp.ne.s32.totalorder %s45, %s46
    %p55 = scmp.eq.s32.totalorder %s14, 0
    %p56 = por %p54, %p55
    %p57 = scmp.ne.s32.totalorder %s45, %s46
    %p58 = scmp.eq.s32.totalorder %s15, 1
    %p59 = por %p57, %p58
    %p61 = scmp.ne.s32.totalorder %s46, %s60
    %p62 = scmp.eq.s32.totalorder %s15, 0
    %p63 = por %p61, %p62
    %s65 = sadd.s32 %s64, 1
    %p68 = scmp.eq.s32.totalorder %s9, 1
    %p69 = scmp.ne.s32.totalorder %s64, %s66
    %p70 = scmp.eq.s32.totalorder %s9, 0
    %p71 = por %p69, %p70
    %p72 = scmp.ne.s32.totalorder %s64, %s66
    %p73 = scmp.eq.s32.totalorder %s14, 1
    %p74 = por %p72, %p73
    %p75 = scmp.ne.s32.totalorder %s66, %s67
    %p76 = scmp.eq.s32.totalorder %s14, 0
    %p77 = por %p75, %p76
    %p78 = scmp.ne.s32.totalorder %s66, %s67
    %p79 = scmp.eq.s32.totalorder %s15, 1
    %p80 = por %p78, %p79
    %p82 = scmp.ne.s32.totalorder %s67, %s81
    %p83 = scmp.eq.s32.totalorder %s15, 0
    %p84 = por %p82, %p83
    %s85 = ssub.s32 %s9, %s16
    %p86 = scmp.eq.s32.totalorder %s85, 0
    %s88 = sadd.s32 %s87, 1
    %s89 = scalar_select %p86, %s87, %s88
    %p92 = pneg %p86
    %p93 = scmp.eq.s32.totalorder %s9, 1
    %p94 = por %p92, %p93
    %p95 = scmp.ne.s32.totalorder %s87, %s90
    %p96 = scmp.eq.s32.totalorder %s9, 0
    %p97 = por %p95, %p96
    %p98 = scmp.ne.s32.totalorder %s87, %s90
    %p99 = scmp.eq.s32.totalorder %s14, 1
    %p100 = por %p98, %p99
    %p101 = scmp.ne.s32.totalorder %s90, %s91
    %p102 = scmp.eq.s32.totalorder %s14, 0
    %p103 = por %p101, %p102
    %p104 = scmp.ne.s32.totalorder %s90, %s91
    %p105 = scmp.eq.s32.totalorder %s15, 1
    %p106 = por %p104, %p105
    %p108 = scmp.ne.s32.totalorder %s91, %s107
    %p109 = scmp.eq.s32.totalorder %s15, 0
    %p110 = por %p108, %p109
    %p111 = scmp.le.s32.totalorder 1, %s9
    %p112 = scmp.lt.s32.totalorder %s9, 3
    %p113 = pnand %p111, %p112
    %p114 = pneg %p113
    // Predicated region
    $region9: #{mlp_forward.1} parent=5 // pred_check
      _
    $region10: #{mlp_forward.1} parent=5 // pred_check_branch
      %116 = sbr.rel (%p113) target = $region12
    $region11: #{mlp_forward.1} parent=5 // pred_region
      %s117 = ssub.s32 %s9, 1
      // Predicated region
      $region13: #{mlp_forward.1} parent=11 // pred_check
        %p118 = pneg %p56
      $region14: #{mlp_forward.1} parent=11 // pred_check_branch
        %120 = sbr.rel (%p118) target = $region16
      $region15: #{mlp_forward.1} parent=11 // pred_region
        _
      $region16: #{mlp_forward.1} parent=11 // pred_fallthru
        _
      // Predicated region
      $region17: #{mlp_forward.1} parent=11 // pred_check
        %p121 = pneg %p77
      $region18: #{mlp_forward.1} parent=11 // pred_check_branch
        %123 = sbr.rel (%p121) target = $region20
      $region19: #{mlp_forward.1} parent=11 // pred_region
        _
      $region20: #{mlp_forward.1} parent=11 // pred_fallthru
        _
    $region12: #{mlp_forward.1} parent=5 // pred_fallthru
      _
    %p124 = scmp.lt.s32.totalorder %s9, 2
    // Predicated region
    $region21: #{mlp_forward.1} parent=5 // pred_check
      %p125 = pneg %p124
    $region22: #{mlp_forward.1} parent=5 // pred_check_branch
      %127 = sbr.rel (%p125) target = $region24
    $region23: #{mlp_forward.1} parent=5 // pred_region
      // Predicated region
      $region25: #{mlp_forward.1} parent=23 // pred_check
        %p128 = pneg %p29
      $region26: #{mlp_forward.1} parent=23 // pred_check_branch
        %130 = sbr.rel (%p128) target = $region28
      $region27: #{mlp_forward.1} parent=23 // pred_region
        %p131 = scmp.lt.s32.totalorder %s9, 1
        %s132 = scalar_select %p131, %s9, 1
        %s133 = smul.addr %s132, 8
        %s134 = scalar_lea.vmem %s0, %s133
      $region28: #{mlp_forward.1} parent=23 // pred_fallthru
        _
    $region24: #{mlp_forward.1} parent=5 // pred_fallthru
      _
    %p135 = scmp.le.s32.totalorder 1, %s9
    %p136 = scmp.lt.s32.totalorder %s9, 3
    %p137 = pnand %p135, %p136
    %p138 = pneg %p137
    // Predicated region
    $region29: #{mlp_forward.1} parent=5 // pred_check
      _
    $region30: #{mlp_forward.1} parent=5 // pred_check_branch
      %140 = sbr.rel (%p137) target = $region32
    $region31: #{mlp_forward.1} parent=5 // pred_region
      %s141 = ssub.s32 %s9, 1
      %p142 = scmp.lt.s32.totalorder %s14, 1
      %s143 = scalar_select %p142, %s14, 1
      %s144 = smul.addr %s143, 8
      %s145 = scalar_lea.vmem %s0, %s144
      %p146 = pneg %p35
      %p147 = pneg %p32
      %p148 = pneg %p56
      %p149 = pneg %p53
      %p150 = pneg %p77
      %p151 = pneg %p74
      %p152 = pneg %p103
      %p153 = pneg %p100
      %p154 = scmp.lt.s32.totalorder %s14, 1
      %s155 = scalar_select %p154, %s14, 1
      %s156 = scalar_lea.vmem %s3, %s155
      %p157 = scmp.lt.s32.totalorder %s14, 1
      %s158 = scalar_select %p157, %s14, 1
      %s159 = smul.addr %s158, 8
      %s160 = scalar_lea.vmem %s0, %s159
      %p161 = scmp.lt.s32.totalorder %s14, 1
      %s162 = scalar_select %p161, %s14, 1
      %s163 = scalar_lea.vmem %s3, %s162
      %v164 = vld [vmem:[%s160] sm:$0xff]
      %v165 = vld [vmem:[%s1] sm:$0xff]
      %v166 = vld [vmem:[%s2] sm:$0xff]
      %168 = vset.pattern.permute.xlu0 0
      %169 = vperm.xlu0 %168, %v166
      %v170 = vpop.permute.xlu0 %169
      %vm172 = vcmask 64512
      %v174 = vsel %vm172, %v165, 0
      %176 = vmatpush.msra.mxu0 0.0
      %177 = vmatpush.msra.mxu0 0.0
      %178 = vmatpush.msra.mxu0 0.0
      %179 = vmatpush.msra.mxu0 0.0
      %180 = vmatpush.msra.mxu0 0.0
      %181 = vmatpush.msra.mxu0 0.0
      %182 = vmatpush.msra.mxu0 0.0
      %183 = vmatpush.msra.mxu0 0.0
      %184 = vmatpush.msra.mxu0 0.0
      %185 = vmatpush.msra.mxu0 0.0
      %186 = vmatpush.msra.mxu0 0.0
      %187 = vmatpush.msra.mxu0 0.0
      %188 = vmatpush.msra.mxu0 0.0
      %189 = vmatpush.msra.mxu0 0.0
      %190 = vmatpush.msra.mxu0 0.0
      %191 = vmatpush.msra.mxu0 %v164
      %192 = vmatmul.f32.gmra.mxu0 %v174
      %v193 = vpop.f32.mrf.mxu0
      %v194 = vadd.f32 %v170, %v193
      %195 = vdwg.mxu0
      %v196 = vmul.f32 %v194, 0.5
      %v197 = vtanh.pop %v196
      %v198 = vmul.f32 %v197, 0.5
      %v199 = vadd.f32 %v198, 0.5
      %v200 = vld [vmem:[%s1 + $0x8] sm:$0xff]
      %v201 = vld [vmem:[%s2 + $0x8] sm:$0xff]
      %203 = vset.pattern.permute.xlu0 0
      %204 = vperm.xlu0 %203, %v201
      %v205 = vpop.permute.xlu0 %204
      %v208 = vsel %vm172, %v200, 0
      %210 = vmatpush.msra.mxu0 0.0
      %211 = vmatpush.msra.mxu0 0.0
      %212 = vmatpush.msra.mxu0 0.0
      %213 = vmatpush.msra.mxu0 0.0
      %214 = vmatpush.msra.mxu0 0.0
      %215 = vmatpush.msra.mxu0 0.0
      %216 = vmatpush.msra.mxu0 0.0
      %217 = vmatpush.msra.mxu0 0.0
      %218 = vmatpush.msra.mxu0 0.0
      %219 = vmatpush.msra.mxu0 0.0
      %220 = vmatpush.msra.mxu0 0.0
      %221 = vmatpush.msra.mxu0 0.0
      %222 = vmatpush.msra.mxu0 0.0
      %223 = vmatpush.msra.mxu0 0.0
      %224 = vmatpush.msra.mxu0 0.0
      %225 = vmatpush.msra.mxu0 %v199
      %226 = vmatmul.f32.gmra.mxu0 %v208
      %v227 = vpop.f32.mrf.mxu0
      %v228 = vadd.f32 %v205, %v227
      %229 = vdwg.mxu0
      %v230 = vmul.f32 %v228, 0.5
      %v231 = vtanh.pop %v230
      %v232 = vmul.f32 %v231, 0.5
      %v233 = vadd.f32 %v232, 0.5
      %v234 = vld [vmem:[%s1 + $0x10] sm:$0xff]
      %v236 = vsel %vm172, %v234, 0
      %238 = vmatpush.msra.mxu0 0.0
      %239 = vmatpush.msra.mxu0 0.0
      %240 = vmatpush.msra.mxu0 0.0
      %241 = vmatpush.msra.mxu0 0.0
      %242 = vmatpush.msra.mxu0 0.0
      %243 = vmatpush.msra.mxu0 0.0
      %244 = vmatpush.msra.mxu0 0.0
      %245 = vmatpush.msra.mxu0 0.0
      %246 = vmatpush.msra.mxu0 0.0
      %247 = vmatpush.msra.mxu0 0.0
      %248 = vmatpush.msra.mxu0 0.0
      %249 = vmatpush.msra.mxu0 0.0
      %250 = vmatpush.msra.mxu0 0.0
      %251 = vmatpush.msra.mxu0 0.0
      %252 = vmatpush.msra.mxu0 0.0
      %253 = vmatpush.msra.mxu0 %v233
      %254 = vmatmul.f32.gmra.mxu0 %v236
      %v255 = vpop.f32.mrf.mxu0
      %v256 = vadd.f32 0.0, %v255
      %257 = vdwg.mxu0
      %v258 = vld [vmem:[%s2 + $0x10] sm:$0x1]
      %260 = vset.pattern.permute.xlu0 0
      %261 = vperm.xlu0 %260, %v258
      %v262 = vpop.permute.xlu0 %261
      %v264 = vadd.f32 %v256, %v262
      %v265 = vmul.f32 %v264, 0.5
      %v266 = vtanh.pop %v265
      %v267 = vmul.f32 %v266, 0.5
      %v268 = vadd.f32 %v267, 0.5
      %269 = vst [vmem:[%s163] sm:$0x1] %v268
      %p270 = scmp.lt.s32.totalorder %s14, 1
      %s271 = scalar_select %p270, %s14, 1
      %s272 = scalar_lea.vmem %s3, %s271
      // Predicated region
      $region33: #{mlp_forward.1} parent=31 // pred_check
        %p273 = pneg %p100
      $region34: #{mlp_forward.1} parent=31 // pred_check_branch
        %275 = sbr.rel (%p273) target = $region36
      $region35: #{mlp_forward.1} parent=31 // pred_region
        _
      $region36: #{mlp_forward.1} parent=31 // pred_fallthru
        _
    $region32: #{mlp_forward.1} parent=5 // pred_fallthru
      _
    %p276 = scmp.le.s32.totalorder 2, %s9
    // Predicated region
    $region37: #{mlp_forward.1} parent=5 // pred_check
      %p277 = pneg %p276
    $region38: #{mlp_forward.1} parent=5 // pred_check_branch
      %279 = sbr.rel (%p277) target = $region40
    $region39: #{mlp_forward.1} parent=5 // pred_region
      %s280 = ssub.s32 %s9, 2
      // Predicated region
      $region41: #{mlp_forward.1} parent=39 // pred_check
        %p281 = pneg %p106
      $region42: #{mlp_forward.1} parent=39 // pred_check_branch
        %283 = sbr.rel (%p281) target = $region44
      $region43: #{mlp_forward.1} parent=39 // pred_region
        %p284 = scmp.lt.s32.totalorder %s15, 1
        %s285 = scalar_select %p284, %s15, 1
        %s286 = scalar_lea.vmem %s3, %s285
      $region44: #{mlp_forward.1} parent=39 // pred_fallthru
        _
    $region40: #{mlp_forward.1} parent=5 // pred_fallthru
      _
  $region6: #{mlp_forward.1} parent=0 // loop_footer
    %s13 = sadd.s32 1, %s9
  $region7: #{mlp_forward.1} parent=0 // loop_footer_branch
    %8 = sbr.rel target = $region3
  $region8: #{mlp_forward.1} parent=0 // loop_exit
    _

</llo_original>
